<compile_context>
chip_gen: v6e
topology: v6e:2x2x1
jax: 0.10.0
libtpu: 0.0.40
codegen_flags: <defaults>
</compile_context>

<pallas_src>
import jax
import jax.numpy as jnp
from jax import lax
from jax.experimental import pallas as pl
from jax.experimental.pallas import tpu as pltpu

EPS = 1e-5
NEG_SLOPE = 0.01           # PyTorch LeakyReLU default
TILE_B_MAX = 2048          # multiple of 256; >= ~2-4 us of work per grid step


def _dnn_kernel(x_ref, w1_ref, b1_ref, w2_ref, b2_ref, w3_ref, b3_ref, o_ref):
    # ---- Layer 1: (Linear + folded BN) -> LeakyReLU ----
    # bf16 operands, fp32 MXU accumulation; bias add in fp32, activation in bf16.
    h = jnp.dot(x_ref[...], w1_ref[...],
                preferred_element_type=jnp.float32) + b1_ref[...]
    h = h.astype(jnp.bfloat16)
    h = jnp.maximum(h, NEG_SLOPE * h)                     # LeakyReLU (2 VALU ops)

    # ---- Layer 2: (Linear + folded BN) -> LeakyReLU ----
    h = jnp.dot(h, w2_ref[...],
                preferred_element_type=jnp.float32) + b2_ref[...]
    h = h.astype(jnp.bfloat16)
    h = jnp.maximum(h, NEG_SLOPE * h)

    # ---- Layer 3: Linear(128, 1) on the MXU with the batch on the lane axis ----
    # (1,128) x (tile_b,128) contracting last dims -> lane-dense (1, tile_b).
    out = lax.dot_general(w3_ref[...], h,
                          dimension_numbers=(((1,), (1,)), ((), ())),
                          preferred_element_type=jnp.float32)
    out = out + b3_ref[0]                                  # scalar bias from SMEM
    o_ref[...] = out.astype(o_ref.dtype)


def fold_bn_params(params):
    """Fold eval-mode BatchNorm1d into the preceding Linear (host side).

    Note: the BN scale gamma*rsqrt(var+eps) is quantized to bf16 together with
    the weights -- acceptable for inference, covered by the relaxed tolerance.
    """
    s1 = params["g1"] * jax.lax.rsqrt(params["v1"] + EPS)            # (1, 256)
    w1 = (params["w1_t"] * s1).astype(jnp.bfloat16)                  # (in, 256)
    b1 = ((params["b1"] - params["m1"]) * s1 + params["be1"]).astype(jnp.float32)

    s2 = params["g2"] * jax.lax.rsqrt(params["v2"] + EPS)            # (1, 128)
    w2 = (params["w2_t"] * s2).astype(jnp.bfloat16)                  # (256, 128)
    b2 = ((params["b2"] - params["m2"]) * s2 + params["be2"]).astype(jnp.float32)

    w3 = params["w3_t"].reshape(1, -1).astype(jnp.bfloat16)          # (1, 128)
    b3 = params["b3"].reshape(-1).astype(jnp.float32)                # (1,)
    return w1, b1, w2, b2, w3, b3


def _pick_tile_b(B):
    if B > TILE_B_MAX:
        return TILE_B_MAX
    # Give the v7x megacore >= 2 grid steps when the batch is big enough to
    # split profitably, keeping the tile a multiple of 256 (lane-aligned output,
    # bf16 sublane-aligned x tile).  Small batches stay as one full block.
    if B >= 1024 and B % 256 == 0:
        return B // 2
    return B


def dnn_classifier_forward(x, params):
    """x: (B, input_dim) float32.  params: dict of fp32 arrays (see init_params)."""
    B, input_dim = x.shape
    w1, b1, w2, b2, w3, b3 = fold_bn_params(params)

    # bf16 x on the host: halves x HBM traffic + VMEM tile (kernel used bf16 anyway).
    x_bf16 = x.astype(jnp.bfloat16)

    tile_b = _pick_tile_b(B)
    grid = (pl.cdiv(B, tile_b),)

    resident = lambda i: (0, 0)   # params: same block every step -> VMEM-resident

    flops = 2 * B * (input_dim * 256 + 256 * 128 + 128)
    bytes_accessed = (
        x_bf16.size * 2 + B * 4                         # x in (bf16), out (fp32)
        + w1.size * 2 + b1.size * 4                     # layer 1 params
        + w2.size * 2 + b2.size * 4                     # layer 2 params
        + w3.size * 2 + b3.size * 4                     # layer 3 params
    )

    # VMEM budget (v7x has only 64 MiB physical / 32 MiB default scoped).
    working_set = (
        2 * tile_b * input_dim * 2                      # x tile, bf16, double-buffered
        + 2 * tile_b * 4                                # (1, tile_b) fp32 out, double-buffered
        + 2 * (w1.size * 2 + w2.size * 2 + w3.size * 2) # bf16 weights
        + 2 * (b1.size * 4 + b2.size * 4)
        + tile_b * 256 * 6 + tile_b * 128 * 6           # fp32 + bf16 intermediates
    )
    vmem_limit = int(min(64 * 2**20, max(16 * 2**20, 2 * working_set)))

    out = pl.pallas_call(
        _dnn_kernel,
        out_shape=jax.ShapeDtypeStruct((1, B), jnp.float32),
        grid=grid,
        in_specs=[
            pl.BlockSpec((tile_b, input_dim), lambda i: (i, 0)),        # x (tiled)
            pl.BlockSpec(w1.shape, resident),                           # w1' (bf16)
            pl.BlockSpec(b1.shape, resident),                           # b1'
            pl.BlockSpec(w2.shape, resident),                           # w2' (bf16)
            pl.BlockSpec(b2.shape, resident),                           # b2'
            pl.BlockSpec(w3.shape, resident),                           # w3 row (bf16)
            pl.BlockSpec(memory_space=pltpu.MemorySpace.SMEM),          # b3 scalar
        ],
        # Lane-dense output: batch lives on the lane axis of a (1, B) slab.
        out_specs=pl.BlockSpec((1, tile_b), lambda i: (0, i)),
        compiler_params=pltpu.CompilerParams(
            dimension_semantics=("parallel",),
            vmem_limit_bytes=vmem_limit,
        ),
        cost_estimate=pl.CostEstimate(
            flops=flops, transcendentals=0, bytes_accessed=bytes_accessed),
    )(x_bf16, w1, b1, w2, b2, w3, b3)

    return out.reshape(B, 1)


def init_params(key, input_dim):
    """Deterministic synthetic parameters matching nn.Module shapes.

    PyTorch Linear weights are (out, in); we store the transpose (in, out).
    BatchNorm1d: gamma, beta, running_mean, running_var per feature as (1, C).
    """
    ks = jax.random.split(key, 16)
    p = {}
    # Linear 1: input_dim -> 256
    p["w1_t"] = jax.random.normal(ks[0], (input_dim, 256), jnp.float32) * 0.05
    p["b1"] = jax.random.normal(ks[1], (1, 256), jnp.float32) * 0.01
    # BatchNorm1d(256)
    p["g1"] = 1.0 + 0.1 * jax.random.normal(ks[2], (1, 256), jnp.float32)
    p["be1"] = 0.1 * jax.random.normal(ks[3], (1, 256), jnp.float32)
    p["m1"] = 0.05 * jax.random.normal(ks[4], (1, 256), jnp.float32)
    p["v1"] = 0.5 + jax.random.uniform(ks[5], (1, 256), jnp.float32)  # > 0
    # Linear 2: 256 -> 128
    p["w2_t"] = jax.random.normal(ks[6], (256, 128), jnp.float32) * 0.05
    p["b2"] = jax.random.normal(ks[7], (1, 128), jnp.float32) * 0.01
    # BatchNorm1d(128)
    p["g2"] = 1.0 + 0.1 * jax.random.normal(ks[8], (1, 128), jnp.float32)
    p["be2"] = 0.1 * jax.random.normal(ks[9], (1, 128), jnp.float32)
    p["m2"] = 0.05 * jax.random.normal(ks[10], (1, 128), jnp.float32)
    p["v2"] = 0.5 + jax.random.uniform(ks[11], (1, 128), jnp.float32)  # > 0
    # Linear 3: 128 -> 1
    p["w3_t"] = jax.random.normal(ks[12], (128, 1), jnp.float32) * 0.05
    p["b3"] = jax.random.normal(ks[13], (1, 1), jnp.float32) * 0.01
    return p


def _reference_forward(x, p):
    """Plain-JAX fp32 reference with identical eval-mode semantics (unfolded BN)."""
    h = x @ p["w1_t"] + p["b1"]
    h = (h - p["m1"]) / jnp.sqrt(p["v1"] + EPS) * p["g1"] + p["be1"]
    h = jnp.where(h >= 0, h, NEG_SLOPE * h)
    h = h @ p["w2_t"] + p["b2"]
    h = (h - p["m2"]) / jnp.sqrt(p["v2"] + EPS) * p["g2"] + p["be2"]
    h = jnp.where(h >= 0, h, NEG_SLOPE * h)
    return h @ p["w3_t"] + p["b3"]


if __name__ == "__main__":
    key = jax.random.PRNGKey(0)
    k_x, k_p = jax.random.split(key)

    batch = 8
    input_dim = 32

    x = jax.random.normal(k_x, (batch, input_dim), jnp.float32)
    params = init_params(k_p, input_dim)

    out = dnn_classifier_forward(x, params)
    out = jax.block_until_ready(out)

    ref = _reference_forward(x, params)
    assert out.shape == (batch, 1), out.shape
    # bf16 matmul operands / bf16 activations (fp32 accumulation) vs fp32 ref.
    assert jnp.allclose(out, ref, atol=5e-2, rtol=5e-2), (
        f"max abs err = {jnp.max(jnp.abs(out - ref))}"
    )
    print("KERNEL_OK")
</pallas_src>

<mosaic_0001>
module attributes {stable_mosaic.version = 11 : i64} {
  func.func @_dnn_kernel(%arg0: i32, %arg1: memref<8x32xbf16, #tpu.memory_space<vmem>>, %arg2: memref<32x256xbf16, #tpu.memory_space<vmem>>, %arg3: memref<1x256xf32, #tpu.memory_space<vmem>>, %arg4: memref<256x128xbf16, #tpu.memory_space<vmem>>, %arg5: memref<1x128xf32, #tpu.memory_space<vmem>>, %arg6: memref<1x128xbf16, #tpu.memory_space<vmem>>, %arg7: memref<1xf32, #tpu.memory_space<smem>>, %arg8: memref<1x8xf32, #tpu.memory_space<vmem>>) attributes {dimension_semantics = [#tpu.dimension_semantics<parallel>], iteration_bounds = array<i64: 1>, scalar_prefetch = 0 : i64, scratch_operands = 0 : i64, tpu.core_type = #tpu.core_type<tc>, window_params = [{transform_indices = @transform_0, window_bounds = array<i64: 8, 32>}, {pipeline_mode = #tpu.pipeline_mode<synchronous>, transform_indices = @transform_1, window_bounds = array<i64: 32, 256>}, {pipeline_mode = #tpu.pipeline_mode<synchronous>, transform_indices = @transform_2, window_bounds = array<i64: 1, 256>}, {pipeline_mode = #tpu.pipeline_mode<synchronous>, transform_indices = @transform_3, window_bounds = array<i64: 256, 128>}, {pipeline_mode = #tpu.pipeline_mode<synchronous>, transform_indices = @transform_4, window_bounds = array<i64: 1, 128>}, {pipeline_mode = #tpu.pipeline_mode<synchronous>, transform_indices = @transform_5, window_bounds = array<i64: 1, 128>}, {transform_indices = @transform_6, window_bounds = array<i64: 1>}, {transform_indices = @transform_7, window_bounds = array<i64: 1, 8>}]} {
    %c0 = arith.constant 0 : index
    %c0_0 = arith.constant 0 : index
    %0 = vector.load %arg1[%c0, %c0_0] : memref<8x32xbf16, #tpu.memory_space<vmem>>, vector<8x32xbf16>
    %c0_1 = arith.constant 0 : index
    %c0_2 = arith.constant 0 : index
    %1 = vector.load %arg2[%c0_1, %c0_2] : memref<32x256xbf16, #tpu.memory_space<vmem>>, vector<32x256xbf16>
    %cst = arith.constant dense<0.000000e+00> : vector<8x256xf32>
    %2 = tpu.matmul %0, %1, %cst {dimension_numbers = #tpu.dot_dimension_numbers<[1], [0], [0], [1], [0, 0, 1, 1], [], []>} : vector<8x32xbf16>, vector<32x256xbf16>, vector<8x256xf32> -> vector<8x256xf32>
    %c0_3 = arith.constant 0 : index
    %c0_4 = arith.constant 0 : index
    %3 = vector.load %arg3[%c0_3, %c0_4] : memref<1x256xf32, #tpu.memory_space<vmem>>, vector<1x256xf32>
    %4 = vector.broadcast %3 : vector<1x256xf32> to vector<8x256xf32>
    %5 = arith.addf %2, %4 : vector<8x256xf32>
    %6 = arith.truncf %5 : vector<8x256xf32> to vector<8x256xbf16>
    %cst_5 = arith.constant 1.000980e-02 : bf16
    %7 = vector.broadcast %cst_5 : bf16 to vector<8x256xbf16>
    %8 = arith.mulf %7, %6 : vector<8x256xbf16>
    %9 = arith.maximumf %6, %8 : vector<8x256xbf16>
    %c0_6 = arith.constant 0 : index
    %c0_7 = arith.constant 0 : index
    %10 = vector.load %arg4[%c0_6, %c0_7] : memref<256x128xbf16, #tpu.memory_space<vmem>>, vector<256x128xbf16>
    %cst_8 = arith.constant dense<0.000000e+00> : vector<8x128xf32>
    %11 = tpu.matmul %9, %10, %cst_8 {dimension_numbers = #tpu.dot_dimension_numbers<[1], [0], [0], [1], [0, 0, 1, 1], [], []>} : vector<8x256xbf16>, vector<256x128xbf16>, vector<8x128xf32> -> vector<8x128xf32>
    %c0_9 = arith.constant 0 : index
    %c0_10 = arith.constant 0 : index
    %12 = vector.load %arg5[%c0_9, %c0_10] : memref<1x128xf32, #tpu.memory_space<vmem>>, vector<1x128xf32>
    %13 = vector.broadcast %12 : vector<1x128xf32> to vector<8x128xf32>
    %14 = arith.addf %11, %13 : vector<8x128xf32>
    %15 = arith.truncf %14 : vector<8x128xf32> to vector<8x128xbf16>
    %cst_11 = arith.constant 1.000980e-02 : bf16
    %16 = vector.broadcast %cst_11 : bf16 to vector<8x128xbf16>
    %17 = arith.mulf %16, %15 : vector<8x128xbf16>
    %18 = arith.maximumf %15, %17 : vector<8x128xbf16>
    %c0_12 = arith.constant 0 : index
    %c0_13 = arith.constant 0 : index
    %19 = vector.load %arg6[%c0_12, %c0_13] : memref<1x128xbf16, #tpu.memory_space<vmem>>, vector<1x128xbf16>
    %cst_14 = arith.constant dense<0.000000e+00> : vector<1x8xf32>
    %20 = tpu.matmul %19, %18, %cst_14 {dimension_numbers = #tpu.dot_dimension_numbers<[1], [1], [0], [0], [0, 0, 1, 0], [], []>} : vector<1x128xbf16>, vector<8x128xbf16>, vector<1x8xf32> -> vector<1x8xf32>
    %c0_15 = arith.constant 0 : index
    %21 = memref.load %arg7[%c0_15] : memref<1xf32, #tpu.memory_space<smem>>
    %22 = vector.broadcast %21 : f32 to vector<1x8xf32>
    %23 = arith.addf %20, %22 : vector<1x8xf32>
    %c0_16 = arith.constant 0 : index
    %c0_17 = arith.constant 0 : index
    %24 = vector.load %arg8[%c0_16, %c0_17] : memref<1x8xf32, #tpu.memory_space<vmem>>, vector<1x8xf32>
    tpu.vector_store %arg8[%c0_16, %c0_17], %23 {strides = array<i32>} : memref<1x8xf32, #tpu.memory_space<vmem>>, vector<1x8xf32>,
    return
  }
  func.func @transform_0(%arg0: i32) -> (i32, i32) {
    %c0_i32 = arith.constant 0 : i32
    %c0_i32_0 = arith.constant 0 : i32
    return %arg0, %c0_i32 : i32, i32
  }
  func.func @transform_1(%arg0: i32) -> (i32, i32) {
    %c0_i32 = arith.constant 0 : i32
    %c0_i32_0 = arith.constant 0 : i32
    %c0_i32_1 = arith.constant 0 : i32
    return %c0_i32, %c0_i32_0 : i32, i32
  }
  func.func @transform_2(%arg0: i32) -> (i32, i32) {
    %c0_i32 = arith.constant 0 : i32
    %c0_i32_0 = arith.constant 0 : i32
    %c0_i32_1 = arith.constant 0 : i32
    return %c0_i32, %c0_i32_0 : i32, i32
  }
  func.func @transform_3(%arg0: i32) -> (i32, i32) {
    %c0_i32 = arith.constant 0 : i32
    %c0_i32_0 = arith.constant 0 : i32
    %c0_i32_1 = arith.constant 0 : i32
    return %c0_i32, %c0_i32_0 : i32, i32
  }
  func.func @transform_4(%arg0: i32) -> (i32, i32) {
    %c0_i32 = arith.constant 0 : i32
    %c0_i32_0 = arith.constant 0 : i32
    %c0_i32_1 = arith.constant 0 : i32
    return %c0_i32, %c0_i32_0 : i32, i32
  }
  func.func @transform_5(%arg0: i32) -> (i32, i32) {
    %c0_i32 = arith.constant 0 : i32
    %c0_i32_0 = arith.constant 0 : i32
    %c0_i32_1 = arith.constant 0 : i32
    return %c0_i32, %c0_i32_0 : i32, i32
  }
  func.func @transform_6(%arg0: i32) -> i32 {
    %c0_i32 = arith.constant 0 : i32
    %c0_i32_0 = arith.constant 0 : i32
    return %c0_i32 : i32
  }
  func.func @transform_7(%arg0: i32) -> (i32, i32) {
    %c0_i32 = arith.constant 0 : i32
    %c0_i32_0 = arith.constant 0 : i32
    return %c0_i32, %arg0 : i32, i32
  }
}

</mosaic_0001>

<llo_original>
// kernel: tpu_custom_call.1
$region0: #{tpu_custom_call.1}
  #allocation0 [shape = 'u32[]', space=smem, size = 0x4, offset = 0x4, fixed_abs, tag = 'smem constant byte address 0x4 - core index']
  #allocation1 [shape = 'u32[144,128]{1,0:T(1,128)}', space=vmem, size = 0x12000, scoped, tag = 'internal scratch']
  #allocation2 [shape = 'f32[1]{0:T(128)S(6)}', space=smem, size = 0x200, scoped, tag = 'scoped memory for tpu_custom_call.1']
  %s0 = inlined_call_operand.hbm [shape: bf16[8,32], index: 0, kind: input, shape index: {}]
  %s1 = inlined_call_operand.hbm [shape: bf16[32,256], index: 1, kind: input, shape index: {}]
  %s2 = inlined_call_operand.vmem [shape: f32[1,256], index: 2, kind: input, shape index: {}]
  %s3 = inlined_call_operand.hbm [shape: bf16[256,128], index: 3, kind: input, shape index: {}]
  %s4 = inlined_call_operand.vmem [shape: f32[1,128], index: 4, kind: input, shape index: {}]
  %s5 = inlined_call_operand.vmem [shape: bf16[1,128], index: 5, kind: input, shape index: {}]
  %s6 = inlined_call_operand.<no memory space> [shape: f32[1], index: 6, kind: input, shape index: {}]
  %s7 = inlined_call_operand.hbm [shape: f32[1,8], index: 7, kind: output, shape index: {}]
  %s8 = sld [smem:[#allocation0]]
  $region50: #{tpu_custom_call.1} parent=0
    _
  %s10 = ssub.s32 1, %s8
  %s11 = scalar_select 0, %s10, %s8
  %12 = sst [smem:[#allocation2]] %s6
  $region1: #{tpu_custom_call.1} parent=0
    #allocation3 [shape = 'u8[2048]{0}', space=vmem, size = 0x800, scoped, tag = 'input window, operand 0, single buffered']
    #allocation4 [shape = 's32[1]{0}', space=sflag, size = 0x4, scoped, tag = 'scoped memory for tpu_custom_call.1']
    #allocation5 [shape = 's32[1]{0}', space=sflag, size = 0x4, scoped, tag = 'scoped memory for tpu_custom_call.1']
    #allocation6 [shape = 'u8[16384]{0}', space=vmem, size = 0x4000, scoped, tag = 'input window, operand 1, single buffered']
    #allocation7 [shape = 's32[1]{0}', space=sflag, size = 0x4, scoped, tag = 'scoped memory for tpu_custom_call.1']
    #allocation8 [shape = 'u8[65536]{0}', space=vmem, size = 0x10000, scoped, tag = 'input window, operand 3, single buffered']
    #allocation9 [shape = 'u8[512]{0}', space=vmem, size = 0x400, scoped, tag = 'output window, operand 0, single buffered']
    %13 = vsyncpa [#allocation4], 0
    %14 = vsyncpa [#allocation7], 0
    %15 = vsyncpa [#allocation5], 0
    // Predicated region
    $region2: #{tpu_custom_call.1} parent=1 // pred_check
      _
    $region3: #{tpu_custom_call.1} parent=1 // pred_check_branch
      %17 = sbr.rel (0) target = $region5
    $region4: #{tpu_custom_call.1} parent=1 // pred_region
      %s19 = ssub.s32 64, 64
      %20 = vsyncadd [#allocation4], %s19
      %s22 = sshll.u32 [#allocation3], 4
      %s23 = int_to_ptr.vmem [resolvable:$true] %s22
      %25 = dma.hbm_to_vmem [thread:$0]  %s0, 64, %s23, [#allocation4]
    $region5: #{tpu_custom_call.1} parent=1 // pred_fallthru
      _
    // Predicated region
    $region6: #{tpu_custom_call.1} parent=1 // pred_check
      _
    $region7: #{tpu_custom_call.1} parent=1 // pred_check_branch
      %27 = sbr.rel (0) target = $region9
    $region8: #{tpu_custom_call.1} parent=1 // pred_region
      %s29 = ssub.s32 512, 512
      %30 = vsyncadd [#allocation7], %s29
      %s31 = sshll.u32 [#allocation6], 4
      %s32 = int_to_ptr.vmem [resolvable:$true] %s31
      %37 = dma.hbm_to_vmem [thread:$0]  %s1, 512, %s32, [#allocation7], 128, 128, 8
    $region9: #{tpu_custom_call.1} parent=1 // pred_fallthru
      _
    // Predicated region
    $region10: #{tpu_custom_call.1} parent=1 // pred_check
      _
    $region11: #{tpu_custom_call.1} parent=1 // pred_check_branch
      %39 = sbr.rel (0) target = $region13
    $region12: #{tpu_custom_call.1} parent=1 // pred_region
      _
    $region13: #{tpu_custom_call.1} parent=1 // pred_fallthru
      _
    // Predicated region
    $region14: #{tpu_custom_call.1} parent=1 // pred_check
      _
    $region15: #{tpu_custom_call.1} parent=1 // pred_check_branch
      %41 = sbr.rel (0) target = $region17
    $region16: #{tpu_custom_call.1} parent=1 // pred_region
      %s43 = ssub.s32 2048, 2048
      %44 = vsyncadd [#allocation7], %s43
      %s45 = sshll.u32 [#allocation8], 4
      %s46 = int_to_ptr.vmem [resolvable:$true] %s45
      %51 = dma.hbm_to_vmem [thread:$0]  %s3, 2048, %s46, [#allocation7], 64, 64, 4
    $region17: #{tpu_custom_call.1} parent=1 // pred_fallthru
      _
    // Predicated region
    $region18: #{tpu_custom_call.1} parent=1 // pred_check
      _
    $region19: #{tpu_custom_call.1} parent=1 // pred_check_branch
      %53 = sbr.rel (0) target = $region21
    $region20: #{tpu_custom_call.1} parent=1 // pred_region
      _
    $region21: #{tpu_custom_call.1} parent=1 // pred_fallthru
      _
    // Predicated region
    $region22: #{tpu_custom_call.1} parent=1 // pred_check
      _
    $region23: #{tpu_custom_call.1} parent=1 // pred_check_branch
      %55 = sbr.rel (0) target = $region25
    $region24: #{tpu_custom_call.1} parent=1 // pred_region
      _
    $region25: #{tpu_custom_call.1} parent=1 // pred_fallthru
      _
    // Predicated region
    $region26: #{tpu_custom_call.1} parent=1 // pred_check
      _
    $region27: #{tpu_custom_call.1} parent=1 // pred_check_branch
      %57 = sbr.rel (0) target = $region29
    $region28: #{tpu_custom_call.1} parent=1 // pred_region
      _
    $region29: #{tpu_custom_call.1} parent=1 // pred_fallthru
      _
    // Predicated region
    $region30: #{tpu_custom_call.1} parent=1 // pred_check
      _
    $region31: #{tpu_custom_call.1} parent=1 // pred_check_branch
      %59 = sbr.rel (0) target = $region33
    $region32: #{tpu_custom_call.1} parent=1 // pred_region
      %60 = dma.done [#allocation4], 64
    $region33: #{tpu_custom_call.1} parent=1 // pred_fallthru
      _
    // Predicated region
    $region34: #{tpu_custom_call.1} parent=1 // pred_check
      _
    $region35: #{tpu_custom_call.1} parent=1 // pred_check_branch
      %62 = sbr.rel (0) target = $region37
    $region36: #{tpu_custom_call.1} parent=1 // pred_region
      %63 = dma.done [#allocation7], 512
    $region37: #{tpu_custom_call.1} parent=1 // pred_fallthru
      _
    // Predicated region
    $region38: #{tpu_custom_call.1} parent=1 // pred_check
      _
    $region39: #{tpu_custom_call.1} parent=1 // pred_check_branch
      %65 = sbr.rel (0) target = $region41
    $region40: #{tpu_custom_call.1} parent=1 // pred_region
      %66 = dma.done [#allocation7], 2048
    $region41: #{tpu_custom_call.1} parent=1 // pred_fallthru
      _
    %v69 = vld [vmem:[#allocation3] sm:$0xf]
    %v70 = vld [vmem:[#allocation6] sm:$0xff]
    %v71 = vld [vmem:[#allocation6 + $0x8] sm:$0xff]
    %v72 = vld [vmem:[#allocation6 + $0x10] sm:$0xff]
    %v73 = vld [vmem:[#allocation6 + $0x18] sm:$0xff]
    %v74 = vld [vmem:[%s2] sm:$0x3]
    %v76 = vlaneseq
    %v77 = vshrl.u32 %v76, 7
    %v78 = vsub.s32 0, %v77
    %v79 = vrot.slane %v74, %v78
    %v80 = vlaneseq
    %v81 = vshrl.u32 %v80, 7
    %v82 = vsub.s32 1, %v81
    %v83 = vrot.slane %v74, %v82
    %v90 = vunpack.c.l.b16 %v70
    %v91 = vunpack.c.h.b16 %v70
    %v92 = vunpack.c.l.b16 %v71
    %v93 = vunpack.c.h.b16 %v71
    %v94 = vunpack.c.l.b16 %v72
    %v95 = vunpack.c.h.b16 %v72
    %v96 = vunpack.c.l.b16 %v73
    %v97 = vunpack.c.h.b16 %v73
    %v98 = vpack.c.b16 %v92, %v90
    %v99 = vpack.c.b16 %v93, %v91
    %v100 = vpack.c.b16 %v96, %v94
    %v101 = vpack.c.b16 %v97, %v95
    %vm106 = vcmask 261120
    %v108 = vsel %vm106, %v69, 0
    %110 = vmatprep.subr.bf16.mxu0 0
    %111 = vmatpush1.bf16.msra.mxu0 0
    %112 = vmatprep.subr.bf16.mxu0 0
    %113 = vmatpush1.bf16.msra.mxu0 0
    %114 = vmatprep.subr.bf16.mxu0 0
    %115 = vmatpush1.bf16.msra.mxu0 0
    %116 = vmatprep.subr.bf16.mxu0 0
    %117 = vmatpush1.bf16.msra.mxu0 0
    %118 = vmatprep.subr.bf16.mxu0 0
    %119 = vmatpush1.bf16.msra.mxu0 0
    %120 = vmatprep.subr.bf16.mxu0 0
    %121 = vmatpush1.bf16.msra.mxu0 0
    %122 = vmatprep.subr.bf16.mxu0 %v101
    %123 = vmatpush1.bf16.msra.mxu0 %v100
    %124 = vmatprep.subr.bf16.mxu0 %v99
    %125 = vmatpush1.bf16.msra.mxu0 %v98
    %126 = vmatprep.subr.bf16.mxu0 0
    %127 = vmatpush2.bf16.msra.mxu0 0
    %128 = vmatprep.subr.bf16.mxu0 0
    %129 = vmatpush2.bf16.msra.mxu0 0
    %130 = vmatprep.subr.bf16.mxu0 0
    %131 = vmatpush2.bf16.msra.mxu0 0
    %132 = vmatprep.subr.bf16.mxu0 0
    %133 = vmatpush2.bf16.msra.mxu0 0
    %134 = vmatprep.subr.bf16.mxu0 0
    %135 = vmatpush2.bf16.msra.mxu0 0
    %136 = vmatprep.subr.bf16.mxu0 0
    %137 = vmatpush2.bf16.msra.mxu0 0
    %138 = vmatprep.subr.bf16.mxu0 0
    %139 = vmatpush2.bf16.msra.mxu0 0
    %140 = vmatprep.subr.bf16.mxu0 0
    %141 = vmatpush2.bf16.msra.mxu0 0
    %142 = vmatprep.mubr.bf16.mxu0 0
    %143 = vmatmul.mubr.bf16.gmra.mxu0 %v108
    %v144 = vpop.f32.mrf.mxu0
    %v145 = vadd.f32 %v79, %v144
    %v146 = vpop.f32.mrf.mxu0
    %v147 = vadd.f32 %v83, %v146
    %v148 = vpop.f32.mrf.mxu0
    %v149 = vpop.f32.mrf.mxu0
    %150 = vdwg.mxu0
    %v151 = vpack.c.bf16 %v145, %v145
    %v152 = vpack.c.bf16 %v147, %v147
    %v153 = vmul.bf16 %v151, 1009007652
    %v154 = vmul.bf16 %v152, 1009007652
    %v155 = vmax.bf16 %v151, %v153
    %v156 = vmax.bf16 %v152, %v154
    %v157 = vld [vmem:[#allocation8] sm:$0xf]
    %v158 = vld [vmem:[#allocation8 + $0x4] sm:$0xf]
    %v159 = vld [vmem:[#allocation8 + $0x8] sm:$0xf]
    %v160 = vld [vmem:[#allocation8 + $0xc] sm:$0xf]
    %v161 = vld [vmem:[#allocation8 + $0x10] sm:$0xf]
    %v162 = vld [vmem:[#allocation8 + $0x14] sm:$0xf]
    %v163 = vld [vmem:[#allocation8 + $0x18] sm:$0xf]
    %v164 = vld [vmem:[#allocation8 + $0x1c] sm:$0xf]
    %v165 = vld [vmem:[#allocation8 + $0x20] sm:$0xf]
    %v166 = vld [vmem:[#allocation8 + $0x24] sm:$0xf]
    %v167 = vld [vmem:[#allocation8 + $0x28] sm:$0xf]
    %v168 = vld [vmem:[#allocation8 + $0x2c] sm:$0xf]
    %v169 = vld [vmem:[#allocation8 + $0x30] sm:$0xf]
    %v170 = vld [vmem:[#allocation8 + $0x34] sm:$0xf]
    %v171 = vld [vmem:[#allocation8 + $0x38] sm:$0xf]
    %v172 = vld [vmem:[#allocation8 + $0x3c] sm:$0xf]
    %v173 = vld [vmem:[#allocation8 + $0x40] sm:$0xf]
    %v174 = vld [vmem:[#allocation8 + $0x44] sm:$0xf]
    %v175 = vld [vmem:[#allocation8 + $0x48] sm:$0xf]
    %v176 = vld [vmem:[#allocation8 + $0x4c] sm:$0xf]
    %v177 = vld [vmem:[#allocation8 + $0x50] sm:$0xf]
    %v178 = vld [vmem:[#allocation8 + $0x54] sm:$0xf]
    %v179 = vld [vmem:[#allocation8 + $0x58] sm:$0xf]
    %v180 = vld [vmem:[#allocation8 + $0x5c] sm:$0xf]
    %v181 = vld [vmem:[#allocation8 + $0x60] sm:$0xf]
    %v182 = vld [vmem:[#allocation8 + $0x64] sm:$0xf]
    %v183 = vld [vmem:[#allocation8 + $0x68] sm:$0xf]
    %v184 = vld [vmem:[#allocation8 + $0x6c] sm:$0xf]
    %v185 = vld [vmem:[#allocation8 + $0x70] sm:$0xf]
    %v186 = vld [vmem:[#allocation8 + $0x74] sm:$0xf]
    %v187 = vld [vmem:[#allocation8 + $0x78] sm:$0xf]
    %v188 = vld [vmem:[#allocation8 + $0x7c] sm:$0xf]
    %v189 = vld [vmem:[%s4] sm:$0x1]
    %v191 = vlaneseq
    %v192 = vshrl.u32 %v191, 7
    %v193 = vsub.s32 0, %v192
    %v194 = vrot.slane %v189, %v193
    %v228 = vunpack.c.l.b16 %v157
    %v229 = vunpack.c.l.b16 %v158
    %v230 = vunpack.c.l.b16 %v159
    %v231 = vunpack.c.l.b16 %v160
    %v232 = vunpack.c.l.b16 %v161
    %v233 = vunpack.c.l.b16 %v162
    %v234 = vunpack.c.l.b16 %v163
    %v235 = vunpack.c.l.b16 %v164
    %v236 = vunpack.c.l.b16 %v165
    %v237 = vunpack.c.l.b16 %v166
    %v238 = vunpack.c.l.b16 %v167
    %v239 = vunpack.c.l.b16 %v168
    %v240 = vunpack.c.l.b16 %v169
    %v241 = vunpack.c.l.b16 %v170
    %v242 = vunpack.c.l.b16 %v171
    %v243 = vunpack.c.l.b16 %v172
    %v244 = vunpack.c.l.b16 %v173
    %v245 = vunpack.c.l.b16 %v174
    %v246 = vunpack.c.l.b16 %v175
    %v247 = vunpack.c.l.b16 %v176
    %v248 = vunpack.c.l.b16 %v177
    %v249 = vunpack.c.l.b16 %v178
    %v250 = vunpack.c.l.b16 %v179
    %v251 = vunpack.c.l.b16 %v180
    %v252 = vunpack.c.l.b16 %v181
    %v253 = vunpack.c.l.b16 %v182
    %v254 = vunpack.c.l.b16 %v183
    %v255 = vunpack.c.l.b16 %v184
    %v256 = vunpack.c.l.b16 %v185
    %v257 = vunpack.c.l.b16 %v186
    %v258 = vunpack.c.l.b16 %v187
    %v259 = vunpack.c.l.b16 %v188
    %v260 = vpack.c.b16 %v229, %v228
    %v261 = vpack.c.b16 %v231, %v230
    %v262 = vpack.c.b16 %v233, %v232
    %v263 = vpack.c.b16 %v235, %v234
    %v264 = vpack.c.b16 %v237, %v236
    %v265 = vpack.c.b16 %v239, %v238
    %v266 = vpack.c.b16 %v241, %v240
    %v267 = vpack.c.b16 %v243, %v242
    %v268 = vpack.c.b16 %v245, %v244
    %v269 = vpack.c.b16 %v247, %v246
    %v270 = vpack.c.b16 %v249, %v248
    %v271 = vpack.c.b16 %v251, %v250
    %v272 = vpack.c.b16 %v253, %v252
    %v273 = vpack.c.b16 %v255, %v254
    %v274 = vpack.c.b16 %v257, %v256
    %v275 = vpack.c.b16 %v259, %v258
    %292 = vmatprep.subr.bf16.mxu0 0
    %293 = vmatpush1.bf16.msra.mxu0 %v267
    %294 = vmatprep.subr.bf16.mxu0 0
    %295 = vmatpush1.bf16.msra.mxu0 %v266
    %296 = vmatprep.subr.bf16.mxu0 0
    %297 = vmatpush1.bf16.msra.mxu0 %v265
    %298 = vmatprep.subr.bf16.mxu0 0
    %299 = vmatpush1.bf16.msra.mxu0 %v264
    %300 = vmatprep.subr.bf16.mxu0 0
    %301 = vmatpush1.bf16.msra.mxu0 %v263
    %302 = vmatprep.subr.bf16.mxu0 0
    %303 = vmatpush1.bf16.msra.mxu0 %v262
    %304 = vmatprep.subr.bf16.mxu0 0
    %305 = vmatpush1.bf16.msra.mxu0 %v261
    %306 = vmatprep.subr.bf16.mxu0 0
    %307 = vmatpush1.bf16.msra.mxu0 %v260
    %308 = vmatprep.subr.bf16.mxu0 0
    %309 = vmatpush2.bf16.msra.mxu0 %v275
    %310 = vmatprep.subr.bf16.mxu0 0
    %311 = vmatpush2.bf16.msra.mxu0 %v274
    %312 = vmatprep.subr.bf16.mxu0 0
    %313 = vmatpush2.bf16.msra.mxu0 %v273
    %314 = vmatprep.subr.bf16.mxu0 0
    %315 = vmatpush2.bf16.msra.mxu0 %v272
    %316 = vmatprep.subr.bf16.mxu0 0
    %317 = vmatpush2.bf16.msra.mxu0 %v271
    %318 = vmatprep.subr.bf16.mxu0 0
    %319 = vmatpush2.bf16.msra.mxu0 %v270
    %320 = vmatprep.subr.bf16.mxu0 0
    %321 = vmatpush2.bf16.msra.mxu0 %v269
    %322 = vmatprep.subr.bf16.mxu0 0
    %323 = vmatpush2.bf16.msra.mxu0 %v268
    %324 = vmatprep.mubr.bf16.mxu0 %v156
    %325 = vmatmul.mubr.bf16.gmra.mxu0 %v155
    %v326 = vpop.f32.mrf.mxu0
    %v327 = vadd.f32 %v194, %v326
    %v328 = vpop.f32.mrf.mxu0
    %v329 = vpop.f32.mrf.mxu0
    %v330 = vpop.f32.mrf.mxu0
    %331 = vdwg.mxu0
    %v332 = vpack.c.bf16 %v327, %v327
    %v333 = vmul.bf16 %v332, 1009007652
    %v334 = vmax.bf16 %v332, %v333
    %v335 = vld [vmem:[%s5] sm:$0x1]
    %s336 = sld [smem:[#allocation2]]
    %v337 = vstv %s336
    %338 = vmatprep.subr.bf16.mxu0 0
    %339 = vmatpush1.bf16.xpose.msra.mxu0 0
    %340 = vmatprep.subr.bf16.mxu0 0
    %341 = vmatpush1.bf16.xpose.msra.mxu0 0
    %342 = vmatprep.subr.bf16.mxu0 0
    %343 = vmatpush1.bf16.xpose.msra.mxu0 0
    %344 = vmatprep.subr.bf16.mxu0 0
    %345 = vmatpush1.bf16.xpose.msra.mxu0 0
    %346 = vmatprep.subr.bf16.mxu0 0
    %347 = vmatpush1.bf16.xpose.msra.mxu0 0
    %348 = vmatprep.subr.bf16.mxu0 0
    %349 = vmatpush1.bf16.xpose.msra.mxu0 0
    %350 = vmatprep.subr.bf16.mxu0 0
    %351 = vmatpush1.bf16.xpose.msra.mxu0 0
    %352 = vmatprep.subr.bf16.mxu0 0
    %353 = vmatpush1.bf16.xpose.msra.mxu0 %v334
    %354 = vmatprep.subr.bf16.mxu0 0
    %355 = vmatpush2.bf16.xpose.msra.mxu0 0
    %356 = vmatprep.subr.bf16.mxu0 0
    %357 = vmatpush2.bf16.xpose.msra.mxu0 0
    %358 = vmatprep.subr.bf16.mxu0 0
    %359 = vmatpush2.bf16.xpose.msra.mxu0 0
    %360 = vmatprep.subr.bf16.mxu0 0
    %361 = vmatpush2.bf16.xpose.msra.mxu0 0
    %362 = vmatprep.subr.bf16.mxu0 0
    %363 = vmatpush2.bf16.xpose.msra.mxu0 0
    %364 = vmatprep.subr.bf16.mxu0 0
    %365 = vmatpush2.bf16.xpose.msra.mxu0 0
    %366 = vmatprep.subr.bf16.mxu0 0
    %367 = vmatpush2.bf16.xpose.msra.mxu0 0
    %368 = vmatprep.subr.bf16.mxu0 0
    %369 = vmatpush2.bf16.xpose.msra.mxu0 0
    %370 = vmatprep.mubr.bf16.mxu0 0
    %371 = vmatmul.mubr.bf16.gmra.mxu0 %v335
    %v372 = vpop.f32.mrf.mxu0
    %v373 = vadd.f32 %v337, %v372
    %v374 = vpop.f32.mrf.mxu0
    %v375 = vpop.f32.mrf.mxu0
    %v376 = vpop.f32.mrf.mxu0
    %377 = vdwg.mxu0
    %vm378 = vcmask 57344
    %379 = vst.msk [vmem:[#allocation9] sm:$0x1] %vm378, %v373
    // Predicated region
    $region42: #{tpu_custom_call.1} parent=1 // pred_check
      _
    $region43: #{tpu_custom_call.1} parent=1 // pred_check_branch
      %381 = sbr.rel (0) target = $region45
    $region44: #{tpu_custom_call.1} parent=1 // pred_region
      %s383 = ssub.s32 16, 16
      %384 = vsyncadd [#allocation5], %s383
      %s386 = sshll.u32 [#allocation9], 4
      %s387 = int_to_ptr.vmem [resolvable:$true] %s386
      %389 = dma.vmem_to_hbm [thread:$0]  %s387, 16, %s7, [#allocation5]
    $region45: #{tpu_custom_call.1} parent=1 // pred_fallthru
      _
    // Predicated region
    $region46: #{tpu_custom_call.1} parent=1 // pred_check
      _
    $region47: #{tpu_custom_call.1} parent=1 // pred_check_branch
      %391 = sbr.rel (0) target = $region49
    $region48: #{tpu_custom_call.1} parent=1 // pred_region
      %392 = dma.done [#allocation5], 16
    $region49: #{tpu_custom_call.1} parent=1 // pred_fallthru
      _
    %393 = vsyncpa [#allocation4], 1
    %394 = vsyncpa [#allocation7], 1
    %395 = vsyncpa [#allocation5], 1

</llo_original>
